<compile_context>
chip_gen: v7x
topology: tpu7x:2x2x1
jax: 0.10.0
libtpu: 0.0.40
codegen_flags: <defaults>
</compile_context>

<pallas_src>
import math

import jax
import jax.numpy as jnp
from jax.experimental import pallas as pl
from jax.experimental.pallas import tpu as pltpu


def _round_up(n: int, m: int) -> int:
    return ((n + m - 1) // m) * m


def _physical_vmem_bytes() -> int:
    try:
        return int(pltpu.get_tpu_info().vmem_capacity_bytes)
    except Exception:
        return 64 * 2**20  # conservative (v7x per-core) fallback


def _kernel(x_ref, sf_ref, ph_ref, w1_ref, b1_ref, w2_ref, b2_ref, o_ref):
    # x_ref: (TB, 1)   sf/ph: (1, dim)   w1/w2: (dim, dim)   b1/b2: (1, dim)
    # o_ref: (TB, dim)
    # emb = [cos(args) | sin(args)] realized as a single cos via the phase shift
    # baked into ph_ref (second half already has -pi/2 applied).
    args = x_ref[...] * sf_ref[...] + ph_ref[...]          # (TB, dim), f32
    emb = jnp.cos(args)                                    # f32 EUP path

    h = jnp.dot(emb.astype(w1_ref.dtype), w1_ref[...],
                preferred_element_type=jnp.float32) + b1_ref[...]
    h = h * jax.nn.sigmoid(h)                              # SiLU in f32

    out = jnp.dot(h.astype(w2_ref.dtype), w2_ref[...],
                  preferred_element_type=jnp.float32) + b2_ref[...]
    o_ref[...] = out.astype(o_ref.dtype)


def _vmem_estimate(tb, dim, wbytes, out_bytes):
    lanes = _round_up(dim, 128)
    # x tile lane-pads to 128; x & out are double-buffered by the pipeline.
    tiles = 2 * tb * (128 * 4 + lanes * out_bytes)
    # W1, W2 double-buffered (constant index_map but the pipeline still allocates 2),
    # plus sf/ph/b1/b2 rows (sublane-pad to 8).
    weights = 2 * (2 * dim * lanes * wbytes + 4 * 8 * lanes * 4)
    # args / emb / h / out temporaries inside the body.
    work = 5 * tb * lanes * 4
    return tiles + weights + work


def continuous_variable_forward(x, params, *, dim, min_val, max_val, max_period=10,
                                block_b=4096, weights_dtype=jnp.bfloat16,
                                out_dtype=jnp.float32):
    """x: (B,) scalar per example. Returns (B, dim) in out_dtype.

    params = (w1, b1, w2, b2) with w1, w2 of shape (dim, dim) stored (in, out).
    """
    assert dim % 2 == 0, "dim must be even"
    half = dim // 2
    B = x.shape[0]
    inv_range = 1.0 / (max_val - min_val)

    # freqs = exp(-log(max_period) * arange(dim//2) / dim)   (note: / dim, as in torch)
    freqs = jnp.exp(-math.log(max_period)
                    * jnp.arange(half, dtype=jnp.float32) / dim)
    # Fold the (x - min)/range normalization into the constants, and fuse sin into
    # cos by shifting the second half's phase by -pi/2:  cos(t - pi/2) == sin(t).
    scaled = freqs * inv_range                      # (half,)
    phase = freqs * (-min_val * inv_range)          # (half,)
    sf_full = jnp.concatenate([scaled, scaled]).reshape(1, dim)
    ph_full = jnp.concatenate([phase, phase - (math.pi / 2.0)]).reshape(1, dim)

    w1, b1, w2, b2 = params
    w1 = jnp.asarray(w1, jnp.float32).astype(weights_dtype)
    w2 = jnp.asarray(w2, jnp.float32).astype(weights_dtype)
    b1 = jnp.asarray(b1, jnp.float32).reshape(1, dim)
    b2 = jnp.asarray(b2, jnp.float32).reshape(1, dim)

    wbytes = jnp.dtype(weights_dtype).itemsize
    out_bytes = jnp.dtype(out_dtype).itemsize
    phys = _physical_vmem_bytes()
    budget = int(phys * 0.45)

    # Batch tile: as big as the VMEM budget allows (multiple of 8 sublanes).
    tb = _round_up(min(block_b, max(B, 8)), 8)
    while tb > 64 and _vmem_estimate(tb, dim, wbytes, out_bytes) > budget:
        tb = _round_up(tb // 2, 8)
    # Ensure >=2 grid steps when B allows it so both v7x TensorCores get work,
    # without introducing batch padding (only when B splits into two 8-multiples).
    if (B + tb - 1) // tb == 1 and B >= 16 and B % 16 == 0:
        tb = B // 2

    b_pad = _round_up(B, tb)
    x2d = x.astype(jnp.float32).reshape(B, 1)
    if b_pad != B:
        x2d = jnp.pad(x2d, ((0, b_pad - B), (0, 0)))
    grid = (b_pad // tb,)

    est = _vmem_estimate(tb, dim, wbytes, out_bytes)
    vmem_limit = int(min(int(phys * 0.85), max(32 * 2**20, (est * 3) // 2)))

    const = lambda i: (0, 0)  # constants / weights stay VMEM-resident across steps
    # TODO(synk): for very large dim (weights > VMEM budget) stream W2 via a second
    # grid axis over its N columns instead of keeping it resident.
    out = pl.pallas_call(
        _kernel,
        out_shape=jax.ShapeDtypeStruct((b_pad, dim), out_dtype),
        grid=grid,
        in_specs=[
            pl.BlockSpec((tb, 1), lambda i: (i, 0)),   # x tile (streamed)
            pl.BlockSpec((1, dim), const),             # scaled freqs [f|f]
            pl.BlockSpec((1, dim), const),             # phase offsets [p|p-pi/2]
            pl.BlockSpec((dim, dim), const),           # W1
            pl.BlockSpec((1, dim), const),             # b1
            pl.BlockSpec((dim, dim), const),           # W2
            pl.BlockSpec((1, dim), const),             # b2
        ],
        out_specs=pl.BlockSpec((tb, dim), lambda i: (i, 0)),
        compiler_params=pltpu.CompilerParams(
            dimension_semantics=("parallel",),
            vmem_limit_bytes=vmem_limit,
        ),
    )(x2d, sf_full, ph_full, w1, b1, w2, b2)

    if b_pad != B:
        out = out[:B]
    return out


def _reference(x, params, *, dim, min_val, max_val, max_period=10):
    w1, b1, w2, b2 = params
    x01 = (x.astype(jnp.float32) - min_val) / (max_val - min_val)
    freqs = jnp.exp(-math.log(max_period) * jnp.arange(dim // 2, dtype=jnp.float32) / dim)
    args = x01[:, None] * freqs[None]
    emb = jnp.concatenate([jnp.cos(args), jnp.sin(args)], axis=-1)
    h = emb @ w1 + b1.reshape(1, dim)
    h = h * jax.nn.sigmoid(h)
    return h @ w2 + b2.reshape(1, dim)


if __name__ == "__main__":
    dim = 32
    B = 8
    min_val, max_val = 0.0, 100.0

    key = jax.random.PRNGKey(0)
    k1, k2, k3, k4, kx = jax.random.split(key, 5)

    # Deterministic parameter init (shapes from nn.Linear(dim, dim)); stored as (in, out).
    bound = 1.0 / math.sqrt(dim)
    w1 = jax.random.uniform(k1, (dim, dim), jnp.float32, -bound, bound)
    b1 = jax.random.uniform(k2, (1, dim), jnp.float32, -bound, bound)
    w2 = jax.random.uniform(k3, (dim, dim), jnp.float32, -bound, bound)
    b2 = jax.random.uniform(k4, (1, dim), jnp.float32, -bound, bound)
    params = (w1, b1, w2, b2)

    x = jax.random.uniform(kx, (B,), jnp.float32, min_val, max_val)

    ref = _reference(x, params, dim=dim, min_val=min_val, max_val=max_val, max_period=10)

    # f32 weight path: tight tolerance vs reference.
    out_f32 = continuous_variable_forward(
        x, params, dim=dim, min_val=min_val, max_val=max_val, max_period=10,
        weights_dtype=jnp.float32)
    out_f32 = jax.block_until_ready(out_f32)
    assert out_f32.shape == (B, dim)
    assert jnp.allclose(out_f32, ref, atol=5e-5, rtol=5e-5), "f32 path mismatch vs reference"

    # Default bf16 MXU path: looser tolerance (bf16 weights / matmul operands).
    out_bf16 = continuous_variable_forward(
        x, params, dim=dim, min_val=min_val, max_val=max_val, max_period=10)
    out_bf16 = jax.block_until_ready(out_bf16)
    assert out_bf16.shape == (B, dim)
    assert jnp.allclose(out_bf16, ref, atol=2e-2, rtol=2e-2), "bf16 path mismatch vs reference"

    print("KERNEL_OK")
</pallas_src>

<mosaic_0001>
module attributes {stable_mosaic.version = 11 : i64} {
  func.func @_kernel(%arg0: i32, %arg1: memref<8x1xf32, #tpu.memory_space<vmem>>, %arg2: memref<1x32xf32, #tpu.memory_space<vmem>>, %arg3: memref<1x32xf32, #tpu.memory_space<vmem>>, %arg4: memref<32x32xf32, #tpu.memory_space<vmem>>, %arg5: memref<1x32xf32, #tpu.memory_space<vmem>>, %arg6: memref<32x32xf32, #tpu.memory_space<vmem>>, %arg7: memref<1x32xf32, #tpu.memory_space<vmem>>, %arg8: memref<8x32xf32, #tpu.memory_space<vmem>>) attributes {dimension_semantics = [#tpu.dimension_semantics<parallel>], iteration_bounds = array<i64: 1>, scalar_prefetch = 0 : i64, scratch_operands = 0 : i64, tpu.core_type = #tpu.core_type<tc>, window_params = [{transform_indices = @transform_0, window_bounds = array<i64: 8, 1>}, {pipeline_mode = #tpu.pipeline_mode<synchronous>, transform_indices = @transform_1, window_bounds = array<i64: 1, 32>}, {pipeline_mode = #tpu.pipeline_mode<synchronous>, transform_indices = @transform_2, window_bounds = array<i64: 1, 32>}, {pipeline_mode = #tpu.pipeline_mode<synchronous>, transform_indices = @transform_3, window_bounds = array<i64: 32, 32>}, {pipeline_mode = #tpu.pipeline_mode<synchronous>, transform_indices = @transform_4, window_bounds = array<i64: 1, 32>}, {pipeline_mode = #tpu.pipeline_mode<synchronous>, transform_indices = @transform_5, window_bounds = array<i64: 32, 32>}, {pipeline_mode = #tpu.pipeline_mode<synchronous>, transform_indices = @transform_6, window_bounds = array<i64: 1, 32>}, {transform_indices = @transform_7, window_bounds = array<i64: 8, 32>}]} {
    %c0 = arith.constant 0 : index
    %c0_0 = arith.constant 0 : index
    %0 = vector.load %arg1[%c0, %c0_0] : memref<8x1xf32, #tpu.memory_space<vmem>>, vector<8x1xf32>
    %c0_1 = arith.constant 0 : index
    %c0_2 = arith.constant 0 : index
    %1 = vector.load %arg2[%c0_1, %c0_2] : memref<1x32xf32, #tpu.memory_space<vmem>>, vector<1x32xf32>
    %2 = vector.broadcast %0 : vector<8x1xf32> to vector<8x32xf32>
    %3 = vector.broadcast %1 : vector<1x32xf32> to vector<8x32xf32>
    %4 = arith.mulf %2, %3 : vector<8x32xf32>
    %c0_3 = arith.constant 0 : index
    %c0_4 = arith.constant 0 : index
    %5 = vector.load %arg3[%c0_3, %c0_4] : memref<1x32xf32, #tpu.memory_space<vmem>>, vector<1x32xf32>
    %6 = vector.broadcast %5 : vector<1x32xf32> to vector<8x32xf32>
    %7 = arith.addf %4, %6 : vector<8x32xf32>
    %8 = math.cos %7 : vector<8x32xf32>
    %c0_5 = arith.constant 0 : index
    %c0_6 = arith.constant 0 : index
    %9 = vector.load %arg4[%c0_5, %c0_6] : memref<32x32xf32, #tpu.memory_space<vmem>>, vector<32x32xf32>
    %cst = arith.constant dense<0.000000e+00> : vector<8x32xf32>
    %10 = tpu.matmul %8, %9, %cst {dimension_numbers = #tpu.dot_dimension_numbers<[1], [0], [0], [1], [0, 0, 1, 1], [], []>} : vector<8x32xf32>, vector<32x32xf32>, vector<8x32xf32> -> vector<8x32xf32>
    %c0_7 = arith.constant 0 : index
    %c0_8 = arith.constant 0 : index
    %11 = vector.load %arg5[%c0_7, %c0_8] : memref<1x32xf32, #tpu.memory_space<vmem>>, vector<1x32xf32>
    %12 = vector.broadcast %11 : vector<1x32xf32> to vector<8x32xf32>
    %13 = arith.addf %10, %12 : vector<8x32xf32>
    %14 = arith.negf %13 : vector<8x32xf32>
    %15 = math.exp %14 : vector<8x32xf32>
    %cst_9 = arith.constant 1.000000e+00 : f32
    %16 = vector.broadcast %cst_9 : f32 to vector<8x32xf32>
    %17 = arith.addf %16, %15 : vector<8x32xf32>
    %18 = arith.divf %16, %17 : vector<8x32xf32>
    %19 = arith.mulf %13, %18 : vector<8x32xf32>
    %c0_10 = arith.constant 0 : index
    %c0_11 = arith.constant 0 : index
    %20 = vector.load %arg6[%c0_10, %c0_11] : memref<32x32xf32, #tpu.memory_space<vmem>>, vector<32x32xf32>
    %cst_12 = arith.constant dense<0.000000e+00> : vector<8x32xf32>
    %21 = tpu.matmul %19, %20, %cst_12 {dimension_numbers = #tpu.dot_dimension_numbers<[1], [0], [0], [1], [0, 0, 1, 1], [], []>} : vector<8x32xf32>, vector<32x32xf32>, vector<8x32xf32> -> vector<8x32xf32>
    %c0_13 = arith.constant 0 : index
    %c0_14 = arith.constant 0 : index
    %22 = vector.load %arg7[%c0_13, %c0_14] : memref<1x32xf32, #tpu.memory_space<vmem>>, vector<1x32xf32>
    %23 = vector.broadcast %22 : vector<1x32xf32> to vector<8x32xf32>
    %24 = arith.addf %21, %23 : vector<8x32xf32>
    %c0_15 = arith.constant 0 : index
    %c0_16 = arith.constant 0 : index
    %25 = vector.load %arg8[%c0_15, %c0_16] : memref<8x32xf32, #tpu.memory_space<vmem>>, vector<8x32xf32>
    tpu.vector_store %arg8[%c0_15, %c0_16], %24 {strides = array<i32>} : memref<8x32xf32, #tpu.memory_space<vmem>>, vector<8x32xf32>,
    return
  }
  func.func @transform_0(%arg0: i32) -> (i32, i32) {
    %c0_i32 = arith.constant 0 : i32
    %c0_i32_0 = arith.constant 0 : i32
    return %arg0, %c0_i32 : i32, i32
  }
  func.func @transform_1(%arg0: i32) -> (i32, i32) {
    %c0_i32 = arith.constant 0 : i32
    %c0_i32_0 = arith.constant 0 : i32
    %c0_i32_1 = arith.constant 0 : i32
    return %c0_i32, %c0_i32_0 : i32, i32
  }
  func.func @transform_2(%arg0: i32) -> (i32, i32) {
    %c0_i32 = arith.constant 0 : i32
    %c0_i32_0 = arith.constant 0 : i32
    %c0_i32_1 = arith.constant 0 : i32
    return %c0_i32, %c0_i32_0 : i32, i32
  }
  func.func @transform_3(%arg0: i32) -> (i32, i32) {
    %c0_i32 = arith.constant 0 : i32
    %c0_i32_0 = arith.constant 0 : i32
    %c0_i32_1 = arith.constant 0 : i32
    return %c0_i32, %c0_i32_0 : i32, i32
  }
  func.func @transform_4(%arg0: i32) -> (i32, i32) {
    %c0_i32 = arith.constant 0 : i32
    %c0_i32_0 = arith.constant 0 : i32
    %c0_i32_1 = arith.constant 0 : i32
    return %c0_i32, %c0_i32_0 : i32, i32
  }
  func.func @transform_5(%arg0: i32) -> (i32, i32) {
    %c0_i32 = arith.constant 0 : i32
    %c0_i32_0 = arith.constant 0 : i32
    %c0_i32_1 = arith.constant 0 : i32
    return %c0_i32, %c0_i32_0 : i32, i32
  }
  func.func @transform_6(%arg0: i32) -> (i32, i32) {
    %c0_i32 = arith.constant 0 : i32
    %c0_i32_0 = arith.constant 0 : i32
    %c0_i32_1 = arith.constant 0 : i32
    return %c0_i32, %c0_i32_0 : i32, i32
  }
  func.func @transform_7(%arg0: i32) -> (i32, i32) {
    %c0_i32 = arith.constant 0 : i32
    %c0_i32_0 = arith.constant 0 : i32
    return %arg0, %c0_i32 : i32, i32
  }
}

</mosaic_0001>

<llo_original>
// kernel: tpu_custom_call.1
$region0: #{tpu_custom_call.1}
  #allocation0 [shape = 'u32[]', space=smem, size = 0x4, offset = 0x4, fixed_abs, tag = 'smem constant byte address 0x4 - core index']
  #allocation1 [shape = 'u32[144,128]{1,0:T(1,128)}', space=vmem, size = 0x12000, scoped, tag = 'internal scratch']
  %s0 = inlined_call_operand.vmem [shape: f32[8,1], index: 0, kind: input, shape index: {}]
  %s1 = inlined_call_operand.vmem [shape: f32[1,32], index: 1, kind: input, shape index: {}]
  %s2 = inlined_call_operand.vmem [shape: f32[1,32], index: 2, kind: input, shape index: {}]
  %s3 = inlined_call_operand.hbm [shape: f32[32,32], index: 3, kind: input, shape index: {}]
  %s4 = inlined_call_operand.vmem [shape: f32[1,32], index: 4, kind: input, shape index: {}]
  %s5 = inlined_call_operand.hbm [shape: f32[32,32], index: 5, kind: input, shape index: {}]
  %s6 = inlined_call_operand.vmem [shape: f32[1,32], index: 6, kind: input, shape index: {}]
  %s7 = inlined_call_operand.hbm [shape: f32[8,32], index: 7, kind: output, shape index: {}]
  %s8 = sld [smem:[#allocation0]]
  $region46: #{tpu_custom_call.1} parent=0
    _
  %s10 = ssub.s32 1, %s8
  %s11 = scalar_select 0, %s10, %s8
  $region1: #{tpu_custom_call.1} parent=0
    #allocation2 [shape = 'u8[16384]{0}', space=vmem, size = 0x4000, scoped, tag = 'input window, operand 3, single buffered']
    #allocation3 [shape = 's32[1]{0}', space=sflag, size = 0x4, scoped, tag = 'scoped memory for tpu_custom_call.1']
    #allocation4 [shape = 's32[1]{0}', space=sflag, size = 0x4, scoped, tag = 'scoped memory for tpu_custom_call.1']
    #allocation5 [shape = 'u8[16384]{0}', space=vmem, size = 0x4000, scoped, tag = 'input window, operand 5, single buffered']
    #allocation6 [shape = 's32[1]{0}', space=sflag, size = 0x4, scoped, tag = 'scoped memory for tpu_custom_call.1']
    #allocation7 [shape = 'u8[4096]{0}', space=vmem, size = 0x1000, scoped, tag = 'output window, operand 0, single buffered']
    %12 = vsyncpa [#allocation3], 0
    %13 = vsyncpa [#allocation6], 0
    %14 = vsyncpa [#allocation4], 0
    // Predicated region
    $region2: #{tpu_custom_call.1} parent=1 // pred_check
      _
    $region3: #{tpu_custom_call.1} parent=1 // pred_check_branch
      %16 = sbr.rel (0) target = $region5
    $region4: #{tpu_custom_call.1} parent=1 // pred_region
      _
    $region5: #{tpu_custom_call.1} parent=1 // pred_fallthru
      _
    // Predicated region
    $region6: #{tpu_custom_call.1} parent=1 // pred_check
      _
    $region7: #{tpu_custom_call.1} parent=1 // pred_check_branch
      %18 = sbr.rel (0) target = $region9
    $region8: #{tpu_custom_call.1} parent=1 // pred_region
      _
    $region9: #{tpu_custom_call.1} parent=1 // pred_fallthru
      _
    // Predicated region
    $region10: #{tpu_custom_call.1} parent=1 // pred_check
      _
    $region11: #{tpu_custom_call.1} parent=1 // pred_check_branch
      %20 = sbr.rel (0) target = $region13
    $region12: #{tpu_custom_call.1} parent=1 // pred_region
      _
    $region13: #{tpu_custom_call.1} parent=1 // pred_fallthru
      _
    // Predicated region
    $region14: #{tpu_custom_call.1} parent=1 // pred_check
      _
    $region15: #{tpu_custom_call.1} parent=1 // pred_check_branch
      %22 = sbr.rel (0) target = $region17
    $region16: #{tpu_custom_call.1} parent=1 // pred_region
      %s24 = ssub.s32 512, 512
      %25 = vsyncadd [#allocation3], %s24
      %s26 = sshll.u32 [#allocation2], 4
      %s27 = int_to_ptr.vmem [resolvable:$true] %s26
      %32 = dma.hbm_to_vmem [thread:$0]  %s3, 512, %s27, [#allocation3], 128, 128, 8
    $region17: #{tpu_custom_call.1} parent=1 // pred_fallthru
      _
    // Predicated region
    $region18: #{tpu_custom_call.1} parent=1 // pred_check
      _
    $region19: #{tpu_custom_call.1} parent=1 // pred_check_branch
      %34 = sbr.rel (0) target = $region21
    $region20: #{tpu_custom_call.1} parent=1 // pred_region
      _
    $region21: #{tpu_custom_call.1} parent=1 // pred_fallthru
      _
    // Predicated region
    $region22: #{tpu_custom_call.1} parent=1 // pred_check
      _
    $region23: #{tpu_custom_call.1} parent=1 // pred_check_branch
      %36 = sbr.rel (0) target = $region25
    $region24: #{tpu_custom_call.1} parent=1 // pred_region
      %s38 = ssub.s32 512, 512
      %39 = vsyncadd [#allocation6], %s38
      %s40 = sshll.u32 [#allocation5], 4
      %s41 = int_to_ptr.vmem [resolvable:$true] %s40
      %46 = dma.hbm_to_vmem [thread:$0]  %s5, 512, %s41, [#allocation6], 128, 128, 8
    $region25: #{tpu_custom_call.1} parent=1 // pred_fallthru
      _
    // Predicated region
    $region26: #{tpu_custom_call.1} parent=1 // pred_check
      _
    $region27: #{tpu_custom_call.1} parent=1 // pred_check_branch
      %48 = sbr.rel (0) target = $region29
    $region28: #{tpu_custom_call.1} parent=1 // pred_region
      _
    $region29: #{tpu_custom_call.1} parent=1 // pred_fallthru
      _
    // Predicated region
    $region30: #{tpu_custom_call.1} parent=1 // pred_check
      _
    $region31: #{tpu_custom_call.1} parent=1 // pred_check_branch
      %50 = sbr.rel (0) target = $region33
    $region32: #{tpu_custom_call.1} parent=1 // pred_region
      %51 = dma.done [#allocation3], 512
    $region33: #{tpu_custom_call.1} parent=1 // pred_fallthru
      _
    // Predicated region
    $region34: #{tpu_custom_call.1} parent=1 // pred_check
      _
    $region35: #{tpu_custom_call.1} parent=1 // pred_check_branch
      %53 = sbr.rel (0) target = $region37
    $region36: #{tpu_custom_call.1} parent=1 // pred_region
      %54 = dma.done [#allocation6], 512
    $region37: #{tpu_custom_call.1} parent=1 // pred_fallthru
      _
    %v55 = vld [vmem:[%s0] sm:$0xff]
    %v56 = vld [vmem:[%s1] sm:$0x1]
    %58 = vset.pattern.permute.xlu0 0
    %59 = vperm.xlu0 %58, %v55
    %v60 = vpop.permute.xlu0 %59
    %v63 = vlaneseq
    %v64 = vshrl.u32 %v63, 7
    %v65 = vsub.s32 0, %v64
    %v66 = vrot.slane %v56, %v65
    %v68 = vmul.f32 %v60, %v66
    %v69 = vld [vmem:[%s2] sm:$0x1]
    %v71 = vlaneseq
    %v72 = vshrl.u32 %v71, 7
    %v73 = vsub.s32 0, %v72
    %v74 = vrot.slane %v69, %v73
    %v76 = vadd.f32 %v68, %v74
    %v77 = vand.u32 2147483647, %v76
    %vm78 = vcmp.le.f32.partialorder %v77, 0.7853982
    %vm79 = vcmp.lt.s32.totalorder %v76, 0
    %v80 = vand.u32 %v76, 2139095040
    %v81 = vshrl.u32 %v80, 23
    %v82 = vsub.s32 %v81, 127
    %v83 = vand.u32 2147483647, %v76
    %v84 = vand.u32 %v83, 8388607
    %v85 = vor.u32 %v84, 8388608
    %v86 = vsub.s32 0, %v85
    %v87 = vadd.s32 %v82, 1
    %vm88 = vcmp.gt.s32.totalorder %v87, 0
    %v89 = vsel %vm88, %v87, 0
    %v90 = vshrl.u32 %v89, 5
    %v91 = vand.u32 %v89, 31
    %v92 = vsub.s32 32, %v91
    %v93 = vshrl.u32 683565275, %v92
    %v94 = vshll.u32 683565275, %v91
    %v95 = vshrl.u32 2475754826, %v92
    %v96 = vor.u32 %v94, %v95
    %v97 = vshll.u32 2475754826, %v91
    %v98 = vshrl.u32 2131351028, %v92
    %v99 = vor.u32 %v97, %v98
    %v100 = vshll.u32 2131351028, %v91
    %v101 = vshrl.u32 2102212464, %v92
    %v102 = vor.u32 %v100, %v101
    %v103 = vshll.u32 2102212464, %v91
    %v104 = vshrl.u32 920167782, %v92
    %v105 = vor.u32 %v103, %v104
    %v106 = vshll.u32 920167782, %v91
    %v107 = vshrl.u32 1326507024, %v92
    %v108 = vor.u32 %v106, %v107
    %vm109 = vcmp.lt.s32.totalorder %v90, 1
    %vm110 = vcmp.lt.s32.totalorder %v90, 2
    %vm111 = vcmp.lt.s32.totalorder %v90, 3
    %vm112 = vcmp.lt.s32.totalorder %v90, 4
    %v113 = vsel %vm109, %v93, %v96
    %v114 = vsel %vm112, %v102, 2102212464
    %v115 = vsel %vm111, %v99, %v114
    %v116 = vsel %vm110, %v113, %v115
    %v117 = vsel %vm109, %v96, %v99
    %v118 = vsel %vm112, %v105, 920167782
    %v119 = vsel %vm111, %v102, %v118
    %v120 = vsel %vm110, %v117, %v119
    %v121 = vsel %vm109, %v99, %v102
    %v122 = vsel %vm112, %v108, 1326507024
    %v123 = vsel %vm111, %v105, %v122
    %v124 = vsel %vm110, %v121, %v123
    %v125 = vshll.u32 %v85, 8
    %v126 = vmul.u32.u64.compose %v125, %v124
    %v127 = vextract.low.u32 %v126
    %v128 = vextract.high.u32 %v126
    %v129 = vmul.u32.u64.compose %v125, %v120
    %v130 = vextract.low.u32 %v129
    %v131 = vextract.high.u32 %v129
    %v132 = vmul.u32 %v125, %v116
    %v133 = vadd.s32 %v128, %v130
    %vm134 = vc.u32 %v128, %v130
    %v135 = vadd.s32 %v131, 1
    %v136 = vsel %vm134, %v135, %v131
    %v137 = vadd.s32 %v132, %v136
    %v138 = vadd.s32 %v137, 536870912
    %v139 = vshrl.u32 %v138, 30
    %v140 = vshll.u32 %v139, 30
    %v141 = vsub.s32 %v137, %v140
    %vm142 = vcmp.lt.s32.totalorder %v141, 0
    %v143 = vsub.s32 0, %v141
    %v144 = vsel %vm142, %v143, %v141
    %v145 = vclz %v144
    %v146 = vsub.s32 %v145, 2
    %vm147 = vcmp.gt.s32.totalorder 0, %v146
    %v148 = vsel %vm147, 0, %v146
    %v149 = vsub.s32 32, %v148
    %v150 = vshll.u32 %v141, %v148
    %v151 = vshrl.u32 %v133, %v149
    %v152 = vor.u32 %v150, %v151
    %v153 = vsub.s32 4294967266, %v148
    %v154 = vadd.s32 %v153, 127
    %v155 = vshll.u32 %v154, 23
    %v156 = vor.u32 4788187, %v155
    %v157 = vand.u32 2147483647, %v156
    %v159 = vcvt.s32.f32 %v152
    %v160 = vmul.f32 %v159, %v157
    %v161 = vxor.u32 %v160, 2147483648
    %v162 = vsel %vm79, %v161, %v160
    %v163 = vsub.s32 4, %v139
    %v164 = vsel %vm79, %v163, %v139
    %v165 = vsel %vm78, %v76, %v162
    %v166 = vsel %vm78, 0, %v164
    %v167 = vcosq.f32.pop %v165
    %v168 = vsinq.f32.pop %v165
    %vm169 = vweird.f32 %v76
    %v170 = vand.u32 %v166, 3
    %vm171 = vcmp.lt.s32.totalorder %v170, 2
    %vm172 = vcmp.eq.s32.totalorder %v170, 0
    %v173 = vxor.u32 %v168, 2147483648
    %v174 = vsel %vm172, %v167, %v173
    %vm175 = vcmp.eq.s32.totalorder %v170, 2
    %v176 = vxor.u32 %v167, 2147483648
    %v177 = vsel %vm175, %v176, %v168
    %v178 = vsel %vm171, %v174, %v177
    %v179 = vsel %vm169, nan, %v178
    %v180 = vld [vmem:[#allocation2] sm:$0xff]
    %v181 = vld [vmem:[#allocation2 + $0x8] sm:$0xff]
    %v182 = vld [vmem:[#allocation2 + $0x10] sm:$0xff]
    %v183 = vld [vmem:[#allocation2 + $0x18] sm:$0xff]
    %v184 = vld [vmem:[%s4] sm:$0x1]
    %v186 = vlaneseq
    %v187 = vshrl.u32 %v186, 7
    %v188 = vsub.s32 0, %v187
    %v189 = vrot.slane %v184, %v188
    %vm191 = vcmask 261120
    %v193 = vsel %vm191, %v179, 0
    %195 = vmatprep.subr.mxu0 0.0
    %196 = vmatpush1.msra.mxu0 %v180
    %197 = vmatprep.subr.mxu0 0.0
    %198 = vmatpush1.msra.mxu0 %v181
    %199 = vmatprep.subr.mxu0 0.0
    %200 = vmatpush1.msra.mxu0 %v182
    %201 = vmatprep.subr.mxu0 0.0
    %202 = vmatpush1.msra.mxu0 %v183
    %203 = vmatprep.subr.mxu0 0.0
    %204 = vmatpush1.msra.mxu0 0.0
    %205 = vmatprep.subr.mxu0 0.0
    %206 = vmatpush1.msra.mxu0 0.0
    %207 = vmatprep.subr.mxu0 0.0
    %208 = vmatpush1.msra.mxu0 0.0
    %209 = vmatprep.subr.mxu0 0.0
    %210 = vmatpush1.msra.mxu0 0.0
    %211 = vmatprep.subr.mxu0 0.0
    %212 = vmatpush1.msra.mxu0 0.0
    %213 = vmatprep.subr.mxu0 0.0
    %214 = vmatpush1.msra.mxu0 0.0
    %215 = vmatprep.subr.mxu0 0.0
    %216 = vmatpush1.msra.mxu0 0.0
    %217 = vmatprep.subr.mxu0 0.0
    %218 = vmatpush1.msra.mxu0 0.0
    %219 = vmatprep.subr.mxu0 0.0
    %220 = vmatpush1.msra.mxu0 0.0
    %221 = vmatprep.subr.mxu0 0.0
    %222 = vmatpush1.msra.mxu0 0.0
    %223 = vmatprep.subr.mxu0 0.0
    %224 = vmatpush1.msra.mxu0 0.0
    %225 = vmatprep.subr.mxu0 0.0
    %226 = vmatpush1.msra.mxu0 0.0
    %227 = vmatprep.subr.mxu0 0.0
    %228 = vmatpush1.msra.mxu0 0.0
    %229 = vmatprep.subr.mxu0 0.0
    %230 = vmatpush1.msra.mxu0 0.0
    %231 = vmatprep.subr.mxu0 0.0
    %232 = vmatpush1.msra.mxu0 0.0
    %233 = vmatprep.subr.mxu0 0.0
    %234 = vmatpush1.msra.mxu0 0.0
    %235 = vmatprep.subr.mxu0 0.0
    %236 = vmatpush1.msra.mxu0 0.0
    %237 = vmatprep.subr.mxu0 0.0
    %238 = vmatpush1.msra.mxu0 0.0
    %239 = vmatprep.subr.mxu0 0.0
    %240 = vmatpush1.msra.mxu0 0.0
    %241 = vmatprep.subr.mxu0 0.0
    %242 = vmatpush1.msra.mxu0 0.0
    %243 = vmatprep.subr.mxu0 0.0
    %244 = vmatpush1.msra.mxu0 0.0
    %245 = vmatprep.subr.mxu0 0.0
    %246 = vmatpush1.msra.mxu0 0.0
    %247 = vmatprep.subr.mxu0 0.0
    %248 = vmatpush1.msra.mxu0 0.0
    %249 = vmatprep.subr.mxu0 0.0
    %250 = vmatpush1.msra.mxu0 0.0
    %251 = vmatprep.subr.mxu0 0.0
    %252 = vmatpush1.msra.mxu0 0.0
    %253 = vmatprep.subr.mxu0 0.0
    %254 = vmatpush1.msra.mxu0 0.0
    %255 = vmatprep.subr.mxu0 0.0
    %256 = vmatpush1.msra.mxu0 0.0
    %257 = vmatprep.subr.mxu0 0.0
    %258 = vmatpush1.msra.mxu0 0.0
    %259 = vmatprep.mubr.f32.mxu0 0.0
    %260 = vmatmul.mubr.f32.gmra.mrb[0].mxu0 %v193
    %v261 = vpop.f32.mrb[0].mxu0
    %v262 = vadd.f32 %v189, %v261
    %v263 = vpop.f32.mrb[0].mxu0
    %264 = vdwg.mxu0
    %v265 = vxor.u32 %v262, 2147483648
    %v266 = vmul.f32 %v265, 1.442695
    %v267 = vpow.pop %v266
    %v268 = vadd.f32 %v267, 1.0
    %v269 = vrcp.pop %v268
    %v270 = vmul.f32 1.0, %v269
    %v271 = vmul.f32 %v262, %v270
    %v272 = vld [vmem:[#allocation5] sm:$0xff]
    %v273 = vld [vmem:[#allocation5 + $0x8] sm:$0xff]
    %v274 = vld [vmem:[#allocation5 + $0x10] sm:$0xff]
    %v275 = vld [vmem:[#allocation5 + $0x18] sm:$0xff]
    %v276 = vld [vmem:[%s6] sm:$0x1]
    %v278 = vlaneseq
    %v279 = vshrl.u32 %v278, 7
    %v280 = vsub.s32 0, %v279
    %v281 = vrot.slane %v276, %v280
    %v284 = vsel %vm191, %v271, 0
    %286 = vmatprep.subr.mxu0 0.0
    %287 = vmatpush1.msra.mxu0 %v272
    %288 = vmatprep.subr.mxu0 0.0
    %289 = vmatpush1.msra.mxu0 %v273
    %290 = vmatprep.subr.mxu0 0.0
    %291 = vmatpush1.msra.mxu0 %v274
    %292 = vmatprep.subr.mxu0 0.0
    %293 = vmatpush1.msra.mxu0 %v275
    %294 = vmatprep.subr.mxu0 0.0
    %295 = vmatpush1.msra.mxu0 0.0
    %296 = vmatprep.subr.mxu0 0.0
    %297 = vmatpush1.msra.mxu0 0.0
    %298 = vmatprep.subr.mxu0 0.0
    %299 = vmatpush1.msra.mxu0 0.0
    %300 = vmatprep.subr.mxu0 0.0
    %301 = vmatpush1.msra.mxu0 0.0
    %302 = vmatprep.subr.mxu0 0.0
    %303 = vmatpush1.msra.mxu0 0.0
    %304 = vmatprep.subr.mxu0 0.0
    %305 = vmatpush1.msra.mxu0 0.0
    %306 = vmatprep.subr.mxu0 0.0
    %307 = vmatpush1.msra.mxu0 0.0
    %308 = vmatprep.subr.mxu0 0.0
    %309 = vmatpush1.msra.mxu0 0.0
    %310 = vmatprep.subr.mxu0 0.0
    %311 = vmatpush1.msra.mxu0 0.0
    %312 = vmatprep.subr.mxu0 0.0
    %313 = vmatpush1.msra.mxu0 0.0
    %314 = vmatprep.subr.mxu0 0.0
    %315 = vmatpush1.msra.mxu0 0.0
    %316 = vmatprep.subr.mxu0 0.0
    %317 = vmatpush1.msra.mxu0 0.0
    %318 = vmatprep.subr.mxu0 0.0
    %319 = vmatpush1.msra.mxu0 0.0
    %320 = vmatprep.subr.mxu0 0.0
    %321 = vmatpush1.msra.mxu0 0.0
    %322 = vmatprep.subr.mxu0 0.0
    %323 = vmatpush1.msra.mxu0 0.0
    %324 = vmatprep.subr.mxu0 0.0
    %325 = vmatpush1.msra.mxu0 0.0
    %326 = vmatprep.subr.mxu0 0.0
    %327 = vmatpush1.msra.mxu0 0.0
    %328 = vmatprep.subr.mxu0 0.0
    %329 = vmatpush1.msra.mxu0 0.0
    %330 = vmatprep.subr.mxu0 0.0
    %331 = vmatpush1.msra.mxu0 0.0
    %332 = vmatprep.subr.mxu0 0.0
    %333 = vmatpush1.msra.mxu0 0.0
    %334 = vmatprep.subr.mxu0 0.0
    %335 = vmatpush1.msra.mxu0 0.0
    %336 = vmatprep.subr.mxu0 0.0
    %337 = vmatpush1.msra.mxu0 0.0
    %338 = vmatprep.subr.mxu0 0.0
    %339 = vmatpush1.msra.mxu0 0.0
    %340 = vmatprep.subr.mxu0 0.0
    %341 = vmatpush1.msra.mxu0 0.0
    %342 = vmatprep.subr.mxu0 0.0
    %343 = vmatpush1.msra.mxu0 0.0
    %344 = vmatprep.subr.mxu0 0.0
    %345 = vmatpush1.msra.mxu0 0.0
    %346 = vmatprep.subr.mxu0 0.0
    %347 = vmatpush1.msra.mxu0 0.0
    %348 = vmatprep.subr.mxu0 0.0
    %349 = vmatpush1.msra.mxu0 0.0
    %350 = vmatprep.mubr.f32.mxu0 0.0
    %351 = vmatmul.mubr.f32.gmra.mrb[0].mxu0 %v284
    %v352 = vpop.f32.mrb[0].mxu0
    %v353 = vadd.f32 %v281, %v352
    %v354 = vpop.f32.mrb[0].mxu0
    %355 = vdwg.mxu0
    %356 = vst.msk [vmem:[#allocation7] sm:$0xff] %vm191, %v353
    // Predicated region
    $region38: #{tpu_custom_call.1} parent=1 // pred_check
      _
    $region39: #{tpu_custom_call.1} parent=1 // pred_check_branch
      %358 = sbr.rel (0) target = $region41
    $region40: #{tpu_custom_call.1} parent=1 // pred_region
      %s360 = ssub.s32 128, 128
      %361 = vsyncadd [#allocation4], %s360
      %s363 = sshll.u32 [#allocation7], 4
      %s364 = int_to_ptr.vmem [resolvable:$true] %s363
      %366 = dma.vmem_to_hbm [thread:$0]  %s364, 128, %s7, [#allocation4]
    $region41: #{tpu_custom_call.1} parent=1 // pred_fallthru
      _
    // Predicated region
    $region42: #{tpu_custom_call.1} parent=1 // pred_check
      _
    $region43: #{tpu_custom_call.1} parent=1 // pred_check_branch
      %368 = sbr.rel (0) target = $region45
    $region44: #{tpu_custom_call.1} parent=1 // pred_region
      %369 = dma.done [#allocation4], 128
    $region45: #{tpu_custom_call.1} parent=1 // pred_fallthru
      _
    %370 = vsyncpa [#allocation3], 1
    %371 = vsyncpa [#allocation6], 1
    %372 = vsyncpa [#allocation4], 1

</llo_original>
